<compile_context>
chip_gen: v7x
topology: tpu7x:2x2x1
jax: 0.10.0
libtpu: 0.0.40
codegen_flags: <defaults>
</compile_context>

<pallas_src>
import functools

import numpy as np
import jax
import jax.numpy as jnp
from jax.experimental import pallas as pl
from jax.experimental.pallas import tpu as pltpu


def _fused_matrices(wq, wk, wv, wo, perms, d, f, fp):
    """Fold Linear projections + rfft/irfft DFTs + permutations + 1/C mean + Wo.

    Frequency axes are packed as [real | imag]; each half is zero-padded from
    F = d//2 + 1 to `fp` (lane-aligned).  Returns f32 arrays:
      aq, ak : (C, D, 2*fp)   per-copy permuted analysis (Wq^T/Wk^T folded in)
      av     : (D, 2*fp)      analysis for v (Wv^T folded in)
      go     : (2*fp, D)      irfft + Wo^T + 1/num_copies folded together
    """
    n = np.arange(d)[:, None].astype(np.float64)
    k = np.arange(f)[None, :].astype(np.float64)
    ang = 2.0 * np.pi * n * k / d
    cr = np.cos(ang)                      # (D, F)  rfft real part
    ci = -np.sin(ang)                     # (D, F)  rfft imag part
    w = np.full((f,), 2.0)
    w[0] = 1.0
    if d % 2 == 0:
        w[-1] = 1.0
    gr = (w[:, None] / d) * np.cos(ang.T)     # (F, D)  irfft from real
    gi = -(w[:, None] / d) * np.sin(ang.T)    # (F, D)  irfft from imag

    wq_t = np.asarray(wq, np.float64).T       # torch Linear: y = x @ W^T
    wk_t = np.asarray(wk, np.float64).T
    wv_t = np.asarray(wv, np.float64).T
    wo_t = np.asarray(wo, np.float64).T

    perms = np.asarray(perms)
    n_copies = perms.shape[0]

    def per_copy_analysis(w_t):
        br = w_t @ cr                          # (D, F)
        bi = w_t @ ci
        a = np.zeros((n_copies, d, 2 * fp), np.float64)
        a[:, :, :f] = np.transpose(br[:, perms], (1, 0, 2))        # permuted real
        a[:, :, fp:fp + f] = np.transpose(bi[:, perms], (1, 0, 2))  # permuted imag
        return a

    aq = per_copy_analysis(wq_t)
    ak = per_copy_analysis(wk_t)

    av = np.zeros((d, 2 * fp), np.float64)
    av[:, :f] = wv_t @ cr
    av[:, fp:fp + f] = wv_t @ ci

    go = np.zeros((2 * fp, d), np.float64)
    go[:f] = gr @ wo_t
    go[fp:fp + f] = gi @ wo_t
    go /= n_copies

    cast = lambda m: jnp.asarray(m, jnp.float32)
    return cast(aq), cast(ak), cast(av), cast(go)


def _hrr_attn_kernel(x_ref, aq_ref, ak_ref, av_ref, go_ref, o_ref,
                     vf_s, acc_s, pre_s, *, fp, causal, num_copies):
    t = pl.program_id(1)          # sequence tile
    c = pl.program_id(2)          # redundant copy (innermost reduction axis)
    f32 = jnp.float32

    x = x_ref[...]                                              # (Ts, D)

    # Copy-independent work once per (batch, seq-tile): rfft(v) and accumulator reset.
    @pl.when(c == 0)
    def _init():
        vf_s[...] = jnp.dot(x, av_ref[...], preferred_element_type=f32)
        acc_s[...] = jnp.zeros_like(acc_s)

    # Per-copy permuted rfft of q and k with the Linear projections folded in.
    qf = jnp.dot(x, aq_ref[...], preferred_element_type=f32)    # (Ts, 2*fp)
    kf = jnp.dot(x, ak_ref[...], preferred_element_type=f32)
    vf = vf_s[...]

    qr, qi = qf[:, :fp], qf[:, fp:]
    kr, ki = kf[:, :fp], kf[:, fp:]
    vr, vi = vf[:, :fp], vf[:, fp:]

    # Binding: S = Kc * V (complex elementwise), packed [real | imag].
    s_cat = jnp.concatenate([kr * vr - ki * vi, kr * vi + ki * vr], axis=-1)

    ts = s_cat.shape[0]
    if causal:
        # Chunked causal prefix sum: intra-chunk tri-matmul + per-copy f32 carry.
        row = jax.lax.broadcasted_iota(jnp.int32, (ts, ts), 0)
        col = jax.lax.broadcasted_iota(jnp.int32, (ts, ts), 1)
        tril = (col <= row).astype(f32)
        prefix = jnp.where(t > 0, pre_s[c], 0.0)                # (1, 2*fp)
        m_cat = jnp.dot(tril, s_cat, preferred_element_type=f32) + prefix
        pre_s[c] = m_cat[ts - 1:ts, :]                          # carry to next tile
    else:
        # Non-causal: memory is the full-sequence sum (sequence fits one tile).
        m_cat = jnp.sum(s_cat, axis=0, keepdims=True)           # (1, 2*fp), broadcasts

    mr, mi = m_cat[:, :fp], m_cat[:, fp:]

    # Unbinding: R = M * conj(Qc); accumulate over copies in f32.
    acc_s[...] += jnp.concatenate([mr * qr + mi * qi, mi * qr - mr * qi], axis=-1)

    # Finalize: irfft + 1/num_copies + output projection (all folded into go_ref).
    @pl.when(c == num_copies - 1)
    def _finalize():
        o_ref[...] = jnp.dot(acc_s[...], go_ref[...],
                             preferred_element_type=f32).astype(o_ref.dtype)


def redundant_hrr_self_attention(x, wq, wk, wv, wo, perms, *, causal=True,
                                 seq_tile=256, lane_pad=128):
    """x: (B, S, D); wq/wk/wv/wo: PyTorch Linear weights (D_out, D_in);
    perms: (num_copies, D//2+1) integer frequency permutations (concrete)."""
    B, S, D = x.shape
    C, F = perms.shape
    assert F == D // 2 + 1, "permutations must index rfft frequency bins"

    if not causal:
        # TODO(synk): chunked global-sum path; fall back to a single sequence tile.
        seq_tile = S
    seq_tile = min(seq_tile, S)
    assert S % seq_tile == 0, "sequence length must be divisible by seq_tile"
    assert seq_tile == S or seq_tile % 8 == 0, "seq_tile must be sublane aligned"
    nt = S // seq_tile

    fp = -(-F // lane_pad) * lane_pad          # lane-aligned padded frequency count
    fd2 = 2 * fp                               # [real | imag] packed width

    aq, ak, av, go = _fused_matrices(wq, wk, wv, wo, perms, D, F, fp)

    kernel = functools.partial(_hrr_attn_kernel, fp=fp, causal=causal, num_copies=C)

    # Explicit VMEM budget: double-buffered blocks + scratch, with headroom.
    est = 4 * (2 * (2 * seq_tile * D)              # x block + out block
               + 2 * 4 * D * fd2                   # aq, ak, av, go blocks
               + 2 * seq_tile * fd2                # vf_s, acc_s scratch
               + C * 8 * fd2)                      # per-copy prefix carry (padded)
    vmem_limit = min(max(2 * est + (4 << 20), 32 << 20), 128 << 20)

    return pl.pallas_call(
        kernel,
        out_shape=jax.ShapeDtypeStruct((B, S, D), x.dtype),
        grid_spec=pltpu.PrefetchScalarGridSpec(
            num_scalar_prefetch=0,
            grid=(B, nt, C),
            in_specs=[
                pl.BlockSpec((None, seq_tile, D), lambda b, t, c: (b, t, 0)),   # x
                pl.BlockSpec((None, D, fd2), lambda b, t, c: (c, 0, 0)),        # Aq[c]
                pl.BlockSpec((None, D, fd2), lambda b, t, c: (c, 0, 0)),        # Ak[c]
                pl.BlockSpec((D, fd2), lambda b, t, c: (0, 0)),                 # Av
                pl.BlockSpec((fd2, D), lambda b, t, c: (0, 0)),                 # Go
            ],
            out_specs=pl.BlockSpec((None, seq_tile, D), lambda b, t, c: (b, t, 0)),
            scratch_shapes=[
                pltpu.VMEM((seq_tile, fd2), jnp.float32),   # rfft(v) for current tile
                pltpu.VMEM((seq_tile, fd2), jnp.float32),   # copy-accumulated R
                pltpu.VMEM((C, 1, fd2), jnp.float32),       # per-copy causal prefix
            ],
        ),
        compiler_params=pltpu.CompilerParams(
            dimension_semantics=("parallel", "arbitrary", "arbitrary"),
            vmem_limit_bytes=int(vmem_limit)),
    )(x, aq, ak, av, go)


def reference_hrr_attention(x, wq, wk, wv, wo, perms, causal=True):
    """Pure-JAX reference using jnp.fft (mirrors hrr.perm_key_value_query)."""
    D = x.shape[-1]
    q = x @ wq.T
    k = x @ wk.T
    v = x @ wv.T
    qf = jnp.fft.rfft(q, axis=-1)
    kf = jnp.fft.rfft(k, axis=-1)
    vf = jnp.fft.rfft(v, axis=-1)
    qp = jnp.transpose(qf[..., perms], (2, 0, 1, 3))   # (C, B, S, F)
    kp = jnp.transpose(kf[..., perms], (2, 0, 1, 3))
    s = kp * vf[None]
    m = jnp.cumsum(s, axis=2) if causal else jnp.sum(s, axis=2, keepdims=True)
    r = m * jnp.conj(qp)
    vh = jnp.fft.irfft(r, n=D, axis=-1).mean(0)        # (B, S, D)
    return vh @ wo.T


def _check(name, out, ref):
    out = np.asarray(out, np.float64)
    ref = np.asarray(ref, np.float64)
    rel_l2 = np.linalg.norm(out - ref) / (np.linalg.norm(ref) + 1e-12)
    max_abs = np.max(np.abs(out - ref))
    scale = np.max(np.abs(ref)) + 1e-12
    assert rel_l2 < 3e-2, f"{name}: relative L2 error too high: {rel_l2:.3e}"
    assert max_abs < 5e-2 * scale, (
        f"{name}: max abs error {max_abs:.3e} vs scale {scale:.3e}")


if __name__ == "__main__":
    B, S, D, C = 2, 16, 32, 10
    F = D // 2 + 1

    key = jax.random.PRNGKey(0)
    kx, kq, kk, kv, ko, kp = jax.random.split(key, 6)
    scale = 1.0 / np.sqrt(D)
    x = jax.random.normal(kx, (B, S, D), jnp.float32)
    wq = jax.random.normal(kq, (D, D), jnp.float32) * scale   # torch layout (out, in)
    wk = jax.random.normal(kk, (D, D), jnp.float32) * scale
    wv = jax.random.normal(kv, (D, D), jnp.float32) * scale
    wo = jax.random.normal(ko, (D, D), jnp.float32) * scale
    # buffer: torch.randn(C, F).argsort(-1) -> random permutations of frequency bins
    perms = jnp.argsort(jax.random.normal(kp, (C, F)), axis=-1).astype(jnp.int32)

    # Causal path (module default); seq_tile=8 forces 2 sequence chunks so the
    # carried-prefix path is exercised.
    out_c = redundant_hrr_self_attention(x, wq, wk, wv, wo, perms,
                                         causal=True, seq_tile=8)
    out_c = jax.block_until_ready(out_c)
    ref_c = reference_hrr_attention(x, wq, wk, wv, wo, perms, causal=True)
    _check("causal", out_c, ref_c)

    # Non-causal path (full-sequence sum, single tile).
    out_f = redundant_hrr_self_attention(x, wq, wk, wv, wo, perms, causal=False)
    out_f = jax.block_until_ready(out_f)
    ref_f = reference_hrr_attention(x, wq, wk, wv, wo, perms, causal=False)
    _check("non-causal", out_f, ref_f)

    print("KERNEL_OK")
</pallas_src>

<mosaic_0001>
module attributes {stable_mosaic.version = 11 : i64} {
  func.func @_hrr_attn_kernel(%arg0: i32, %arg1: i32, %arg2: i32, %arg3: memref<1x8x32xf32, #tpu.memory_space<vmem>>, %arg4: memref<1x32x256xf32, #tpu.memory_space<vmem>>, %arg5: memref<1x32x256xf32, #tpu.memory_space<vmem>>, %arg6: memref<32x256xf32, #tpu.memory_space<vmem>>, %arg7: memref<256x32xf32, #tpu.memory_space<vmem>>, %arg8: memref<1x8x32xf32, #tpu.memory_space<vmem>>, %arg9: memref<8x256xf32, #tpu.memory_space<vmem>>, %arg10: memref<8x256xf32, #tpu.memory_space<vmem>>, %arg11: memref<10x1x256xf32, #tpu.memory_space<vmem>>) attributes {dimension_semantics = [#tpu.dimension_semantics<parallel>, #tpu.dimension_semantics<arbitrary>, #tpu.dimension_semantics<arbitrary>], iteration_bounds = array<i64: 2, 2, 10>, scalar_prefetch = 0 : i64, scratch_operands = 3 : i64, tpu.core_type = #tpu.core_type<tc>, window_params = [{transform_indices = @transform_0, window_bounds = array<i64: 1, 8, 32>}, {transform_indices = @transform_1, window_bounds = array<i64: 1, 32, 256>}, {transform_indices = @transform_2, window_bounds = array<i64: 1, 32, 256>}, {pipeline_mode = #tpu.pipeline_mode<synchronous>, transform_indices = @transform_3, window_bounds = array<i64: 32, 256>}, {pipeline_mode = #tpu.pipeline_mode<synchronous>, transform_indices = @transform_4, window_bounds = array<i64: 256, 32>}, {transform_indices = @transform_5, window_bounds = array<i64: 1, 8, 32>}]} {
    %c0 = arith.constant 0 : index
    %c0_0 = arith.constant 0 : index
    %c0_1 = arith.constant 0 : index
    %0 = vector.load %arg3[%c0, %c0_0, %c0_1] : memref<1x8x32xf32, #tpu.memory_space<vmem>>, vector<1x8x32xf32>
    %1 = vector.shape_cast %0 : vector<1x8x32xf32> to vector<8x32xf32>
    %c0_i32 = arith.constant 0 : i32
    %2 = arith.cmpi eq, %arg2, %c0_i32 : i32
    %3 = arith.extui %2 : i1 to i32
    %c0_i32_2 = arith.constant 0 : i32
    %4 = arith.cmpi ne, %3, %c0_i32_2 : i32
    scf.if %4 {
      %c0_24 = arith.constant 0 : index
      %c0_25 = arith.constant 0 : index
      %59 = vector.load %arg6[%c0_24, %c0_25] : memref<32x256xf32, #tpu.memory_space<vmem>>, vector<32x256xf32>
      %cst_26 = arith.constant dense<0.000000e+00> : vector<8x256xf32>
      %60 = tpu.matmul %1, %59, %cst_26 {dimension_numbers = #tpu.dot_dimension_numbers<[1], [0], [0], [1], [0, 0, 1, 1], [], []>} : vector<8x32xf32>, vector<32x256xf32>, vector<8x256xf32> -> vector<8x256xf32>
      %c0_27 = arith.constant 0 : index
      %c0_28 = arith.constant 0 : index
      %61 = vector.load %arg9[%c0_27, %c0_28] : memref<8x256xf32, #tpu.memory_space<vmem>>, vector<8x256xf32>
      tpu.vector_store %arg9[%c0_27, %c0_28], %60 {strides = array<i32>} : memref<8x256xf32, #tpu.memory_space<vmem>>, vector<8x256xf32>,
      %cst_29 = arith.constant 0.000000e+00 : f32
      %62 = vector.broadcast %cst_29 : f32 to vector<8x256xf32>
      %c0_30 = arith.constant 0 : index
      %c0_31 = arith.constant 0 : index
      %63 = vector.load %arg10[%c0_30, %c0_31] : memref<8x256xf32, #tpu.memory_space<vmem>>, vector<8x256xf32>
      tpu.vector_store %arg10[%c0_30, %c0_31], %62 {strides = array<i32>} : memref<8x256xf32, #tpu.memory_space<vmem>>, vector<8x256xf32>,
    } else {
    }
    %c0_3 = arith.constant 0 : index
    %c0_4 = arith.constant 0 : index
    %c0_5 = arith.constant 0 : index
    %5 = vector.load %arg4[%c0_3, %c0_4, %c0_5] : memref<1x32x256xf32, #tpu.memory_space<vmem>>, vector<1x32x256xf32>
    %6 = vector.shape_cast %5 : vector<1x32x256xf32> to vector<32x256xf32>
    %cst = arith.constant dense<0.000000e+00> : vector<8x256xf32>
    %7 = tpu.matmul %1, %6, %cst {dimension_numbers = #tpu.dot_dimension_numbers<[1], [0], [0], [1], [0, 0, 1, 1], [], []>} : vector<8x32xf32>, vector<32x256xf32>, vector<8x256xf32> -> vector<8x256xf32>
    %c0_6 = arith.constant 0 : index
    %c0_7 = arith.constant 0 : index
    %c0_8 = arith.constant 0 : index
    %8 = vector.load %arg5[%c0_6, %c0_7, %c0_8] : memref<1x32x256xf32, #tpu.memory_space<vmem>>, vector<1x32x256xf32>
    %9 = vector.shape_cast %8 : vector<1x32x256xf32> to vector<32x256xf32>
    %cst_9 = arith.constant dense<0.000000e+00> : vector<8x256xf32>
    %10 = tpu.matmul %1, %9, %cst_9 {dimension_numbers = #tpu.dot_dimension_numbers<[1], [0], [0], [1], [0, 0, 1, 1], [], []>} : vector<8x32xf32>, vector<32x256xf32>, vector<8x256xf32> -> vector<8x256xf32>
    %c0_10 = arith.constant 0 : index
    %c0_11 = arith.constant 0 : index
    %11 = vector.load %arg9[%c0_10, %c0_11] : memref<8x256xf32, #tpu.memory_space<vmem>>, vector<8x256xf32>
    %12 = vector.extract_strided_slice %7 {offsets = [0, 0], sizes = [8, 128], strides = [1, 1]} : vector<8x256xf32> to vector<8x128xf32>
    %13 = vector.extract_strided_slice %7 {offsets = [0, 128], sizes = [8, 128], strides = [1, 1]} : vector<8x256xf32> to vector<8x128xf32>
    %14 = vector.extract_strided_slice %10 {offsets = [0, 0], sizes = [8, 128], strides = [1, 1]} : vector<8x256xf32> to vector<8x128xf32>
    %15 = vector.extract_strided_slice %10 {offsets = [0, 128], sizes = [8, 128], strides = [1, 1]} : vector<8x256xf32> to vector<8x128xf32>
    %16 = vector.extract_strided_slice %11 {offsets = [0, 0], sizes = [8, 128], strides = [1, 1]} : vector<8x256xf32> to vector<8x128xf32>
    %17 = vector.extract_strided_slice %11 {offsets = [0, 128], sizes = [8, 128], strides = [1, 1]} : vector<8x256xf32> to vector<8x128xf32>
    %18 = arith.mulf %14, %16 : vector<8x128xf32>
    %19 = arith.mulf %15, %17 : vector<8x128xf32>
    %20 = arith.subf %18, %19 : vector<8x128xf32>
    %21 = arith.mulf %14, %17 : vector<8x128xf32>
    %22 = arith.mulf %15, %16 : vector<8x128xf32>
    %23 = arith.addf %21, %22 : vector<8x128xf32>
    %24 = tpu.concatenate %20, %23 in 1 : vector<8x128xf32>, vector<8x128xf32> -> vector<8x256xf32>
    %25 = tpu.iota {dimensions = array<i32: 0>} : vector<8x8xi32>
    %26 = tpu.iota {dimensions = array<i32: 1>} : vector<8x8xi32>
    %27 = arith.cmpi sle, %26, %25 : vector<8x8xi32>
    %28 = arith.extui %27 : vector<8x8xi1> to vector<8x8xi32>
    %29 = arith.sitofp %28 : vector<8x8xi32> to vector<8x8xf32>
    %c0_i32_12 = arith.constant 0 : i32
    %30 = arith.cmpi sgt, %arg1, %c0_i32_12 : i32
    %31 = arith.index_cast %arg2 : i32 to index
    %c0_13 = arith.constant 0 : index
    %c0_14 = arith.constant 0 : index
    %32 = vector.load %arg11[%31, %c0_13, %c0_14] : memref<10x1x256xf32, #tpu.memory_space<vmem>>, vector<1x1x256xf32>
    %33 = vector.shape_cast %32 : vector<1x1x256xf32> to vector<1x256xf32>
    %cst_15 = arith.constant 0.000000e+00 : f32
    %34 = vector.broadcast %cst_15 : f32 to vector<1x256xf32>
    %35 = arith.select %30, %33, %34 : vector<1x256xf32>
    %cst_16 = arith.constant dense<0.000000e+00> : vector<8x256xf32>
    %36 = tpu.matmul %29, %24, %cst_16 {dimension_numbers = #tpu.dot_dimension_numbers<[1], [0], [0], [1], [0, 0, 1, 1], [], []>} : vector<8x8xf32>, vector<8x256xf32>, vector<8x256xf32> -> vector<8x256xf32>
    %37 = vector.broadcast %35 : vector<1x256xf32> to vector<8x256xf32>
    %38 = arith.addf %36, %37 : vector<8x256xf32>
    %39 = vector.extract_strided_slice %38 {offsets = [7, 0], sizes = [1, 256], strides = [1, 1]} : vector<8x256xf32> to vector<1x256xf32>
    %40 = arith.index_cast %arg2 : i32 to index
    %c0_17 = arith.constant 0 : index
    %c0_18 = arith.constant 0 : index
    %41 = vector.load %arg11[%40, %c0_17, %c0_18] : memref<10x1x256xf32, #tpu.memory_space<vmem>>, vector<1x1x256xf32>
    %42 = vector.shape_cast %41 : vector<1x1x256xf32> to vector<1x256xf32>
    %43 = vector.shape_cast %39 : vector<1x256xf32> to vector<1x1x256xf32>
    tpu.vector_store %arg11[%40, %c0_17, %c0_18], %43 {strides = array<i32>} : memref<10x1x256xf32, #tpu.memory_space<vmem>>, vector<1x1x256xf32>,
    %44 = vector.extract_strided_slice %38 {offsets = [0, 0], sizes = [8, 128], strides = [1, 1]} : vector<8x256xf32> to vector<8x128xf32>
    %45 = vector.extract_strided_slice %38 {offsets = [0, 128], sizes = [8, 128], strides = [1, 1]} : vector<8x256xf32> to vector<8x128xf32>
    %c0_19 = arith.constant 0 : index
    %c0_20 = arith.constant 0 : index
    %46 = vector.load %arg10[%c0_19, %c0_20] : memref<8x256xf32, #tpu.memory_space<vmem>>, vector<8x256xf32>
    %47 = arith.mulf %44, %12 : vector<8x128xf32>
    %48 = arith.mulf %45, %13 : vector<8x128xf32>
    %49 = arith.addf %47, %48 : vector<8x128xf32>
    %50 = arith.mulf %45, %12 : vector<8x128xf32>
    %51 = arith.mulf %44, %13 : vector<8x128xf32>
    %52 = arith.subf %50, %51 : vector<8x128xf32>
    %53 = tpu.concatenate %49, %52 in 1 : vector<8x128xf32>, vector<8x128xf32> -> vector<8x256xf32>
    %54 = arith.addf %46, %53 : vector<8x256xf32>
    %c0_21 = arith.constant 0 : index
    %c0_22 = arith.constant 0 : index
    %55 = vector.load %arg10[%c0_21, %c0_22] : memref<8x256xf32, #tpu.memory_space<vmem>>, vector<8x256xf32>
    tpu.vector_store %arg10[%c0_21, %c0_22], %54 {strides = array<i32>} : memref<8x256xf32, #tpu.memory_space<vmem>>, vector<8x256xf32>,
    %c9_i32 = arith.constant 9 : i32
    %56 = arith.cmpi eq, %arg2, %c9_i32 : i32
    %57 = arith.extui %56 : i1 to i32
    %c0_i32_23 = arith.constant 0 : i32
    %58 = arith.cmpi ne, %57, %c0_i32_23 : i32
    scf.if %58 {
      %c0_24 = arith.constant 0 : index
      %c0_25 = arith.constant 0 : index
      %59 = vector.load %arg10[%c0_24, %c0_25] : memref<8x256xf32, #tpu.memory_space<vmem>>, vector<8x256xf32>
      %c0_26 = arith.constant 0 : index
      %c0_27 = arith.constant 0 : index
      %60 = vector.load %arg7[%c0_26, %c0_27] : memref<256x32xf32, #tpu.memory_space<vmem>>, vector<256x32xf32>
      %cst_28 = arith.constant dense<0.000000e+00> : vector<8x32xf32>
      %61 = tpu.matmul %59, %60, %cst_28 {dimension_numbers = #tpu.dot_dimension_numbers<[1], [0], [0], [1], [0, 0, 1, 1], [], []>} : vector<8x256xf32>, vector<256x32xf32>, vector<8x32xf32> -> vector<8x32xf32>
      %c0_29 = arith.constant 0 : index
      %c0_30 = arith.constant 0 : index
      %c0_31 = arith.constant 0 : index
      %62 = vector.load %arg8[%c0_29, %c0_30, %c0_31] : memref<1x8x32xf32, #tpu.memory_space<vmem>>, vector<1x8x32xf32>
      %63 = vector.shape_cast %62 : vector<1x8x32xf32> to vector<8x32xf32>
      %64 = vector.shape_cast %61 : vector<8x32xf32> to vector<1x8x32xf32>
      tpu.vector_store %arg8[%c0_29, %c0_30, %c0_31], %64 {strides = array<i32>} : memref<1x8x32xf32, #tpu.memory_space<vmem>>, vector<1x8x32xf32>,
    } else {
    }
    return
  }
  func.func @transform_0(%arg0: i32, %arg1: i32, %arg2: i32) -> (i32, i32, i32) {
    %c0_i32 = arith.constant 0 : i32
    %c0_i32_0 = arith.constant 0 : i32
    return %arg0, %arg1, %c0_i32 : i32, i32, i32
  }
  func.func @transform_1(%arg0: i32, %arg1: i32, %arg2: i32) -> (i32, i32, i32) {
    %c0_i32 = arith.constant 0 : i32
    %c0_i32_0 = arith.constant 0 : i32
    %c0_i32_1 = arith.constant 0 : i32
    return %arg2, %c0_i32, %c0_i32_0 : i32, i32, i32
  }
  func.func @transform_2(%arg0: i32, %arg1: i32, %arg2: i32) -> (i32, i32, i32) {
    %c0_i32 = arith.constant 0 : i32
    %c0_i32_0 = arith.constant 0 : i32
    %c0_i32_1 = arith.constant 0 : i32
    return %arg2, %c0_i32, %c0_i32_0 : i32, i32, i32
  }
  func.func @transform_3(%arg0: i32, %arg1: i32, %arg2: i32) -> (i32, i32) {
    %c0_i32 = arith.constant 0 : i32
    %c0_i32_0 = arith.constant 0 : i32
    %c0_i32_1 = arith.constant 0 : i32
    return %c0_i32, %c0_i32_0 : i32, i32
  }
  func.func @transform_4(%arg0: i32, %arg1: i32, %arg2: i32) -> (i32, i32) {
    %c0_i32 = arith.constant 0 : i32
    %c0_i32_0 = arith.constant 0 : i32
    %c0_i32_1 = arith.constant 0 : i32
    return %c0_i32, %c0_i32_0 : i32, i32
  }
  func.func @transform_5(%arg0: i32, %arg1: i32, %arg2: i32) -> (i32, i32, i32) {
    %c0_i32 = arith.constant 0 : i32
    %c0_i32_0 = arith.constant 0 : i32
    return %arg0, %arg1, %c0_i32 : i32, i32, i32
  }
}

</mosaic_0001>

<llo_original>
// kernel: tpu_custom_call.1
$region0: #{tpu_custom_call.1}
  #allocation0 [shape = 'u32[]', space=smem, size = 0x4, offset = 0x4, fixed_abs, tag = 'smem constant byte address 0x4 - core index']
  #allocation1 [shape = 'u32[144,128]{1,0:T(1,128)}', space=vmem, size = 0x12000, scoped, tag = 'internal scratch']
  #allocation2 [shape = 'f32[8,256]{1,0:T(8,128)}', space=vmem, size = 0x2000, scoped, tag = 'scratch operand']
  #allocation3 [shape = 'f32[8,256]{1,0:T(8,128)}', space=vmem, size = 0x2000, scoped, tag = 'scratch operand']
  #allocation4 [shape = 'f32[10,1,256]{2,1,0:T(1,128)}', space=vmem, size = 0x2800, scoped, tag = 'scratch operand']
  %s0 = inlined_call_operand.vmem [shape: f32[2,16,32], index: 0, kind: input, shape index: {}]
  %s1 = inlined_call_operand.hbm [shape: f32[10,32,256], index: 1, kind: input, shape index: {}]
  %s2 = inlined_call_operand.hbm [shape: f32[10,32,256], index: 2, kind: input, shape index: {}]
  %s3 = inlined_call_operand.vmem [shape: f32[32,256], index: 3, kind: input, shape index: {}]
  %s4 = inlined_call_operand.vmem [shape: f32[256,32], index: 4, kind: input, shape index: {}]
  %s5 = inlined_call_operand.hbm [shape: f32[2,16,32], index: 5, kind: output, shape index: {}]
  %s6 = sld [smem:[#allocation0]]
  $region69: #{tpu_custom_call.1} parent=0
    _
  %s8 = ssub.s32 1, %s6
  %s9 = scalar_select 0, %s8, %s6
  $region1: #{tpu_custom_call.1} parent=0
    #allocation5 [shape = 'u8[65536]{0}', space=vmem, size = 0x10000, scoped, tag = 'input window, operand 1']
    #allocation6 [shape = 's32[2]{0}', space=sflag, size = 0x8, scoped, tag = 'scoped memory for tpu_custom_call.1']
    #allocation7 [shape = 's32[2]{0}', space=sflag, size = 0x8, scoped, tag = 'scoped memory for tpu_custom_call.1']
    #allocation8 [shape = 'u8[65536]{0}', space=vmem, size = 0x10000, scoped, tag = 'input window, operand 2']
    #allocation9 [shape = 's32[2]{0}', space=sflag, size = 0x8, scoped, tag = 'scoped memory for tpu_custom_call.1']
    #allocation10 [shape = 'u8[8192]{0}', space=vmem, size = 0x2000, scoped, tag = 'output window, operand 0']
    %10 = vsyncpa [#allocation6], 0
    %s11 = scalar_lea.sflag [#allocation6], 1
    %12 = vsyncpa %s11, 0
    %13 = vsyncpa [#allocation9], 0
    %s14 = scalar_lea.sflag [#allocation9], 1
    %15 = vsyncpa %s14, 0
    %16 = vsyncpa [#allocation7], 0
    %s17 = scalar_lea.sflag [#allocation7], 1
    %18 = vsyncpa %s17, 0
    loop: start=0, step=1, limit=42
    $region2: #{tpu_custom_call.1} parent=1 // loop_pre_header
      _
    $region3: #{tpu_custom_call.1} parent=1 // loop_header
      %s20 = sphi 0, %s24
      %p21 = scmp.ge.s32.totalorder %s20, 42
      %s27 = sphi 0, %s46
      %s28 = sphi 0, %s42
      %s29 = sphi 0, %s38
      %s30 = sphi 0, %s27
      %s31 = sphi 0, %s28
      %s32 = sphi 0, %s29
      %s33 = sphi 0, %s30
      %s34 = sphi 0, %s31
      %s35 = sphi 0, %s32
      %s51 = sphi 0, %s53
      %s54 = sphi 0, %s51
      %s55 = sphi 0, %s54
      %s71 = sphi 0, %s55
      %s77 = sphi 0, %s79
      %s80 = sphi 0, %s77
      %s81 = sphi 0, %s80
      %s97 = sphi 0, %s81
      %s103 = sphi 0, %s105
      %s106 = sphi 0, %s103
      %s107 = sphi 0, %s106
      %s123 = sphi 0, %s107
      %s127 = sphi 0, %s127
      %s129 = sphi 0, %s127
      %s130 = sphi 0, %s129
      %s144 = sphi 0, %s130
      %s148 = sphi 0, %s148
      %s150 = sphi 0, %s148
      %s151 = sphi 0, %s150
      %s165 = sphi 0, %s151
      %s173 = sphi 0, %s175
      %s176 = sphi 0, %s173
      %s177 = sphi 0, %s176
      %s193 = sphi 0, %s177
    $region4: #{tpu_custom_call.1} parent=1 // loop_header_branch
      %23 = sbr.rel (%p21) target = $region8
    $region5: #{tpu_custom_call.1} parent=1 // loop_body
      %s25 = ssub.s32 %s20, 1
      %s26 = ssub.s32 %s20, 2
      %s36 = sadd.s32 1, %s29
      %p37 = scmp.ge.s32.totalorder %s36, 10
      %s38 = scalar_select %p37, 0, %s36
      %s39 = sadd.s32 1, %s28
      %s40 = scalar_select %p37, %s39, %s28
      %p41 = scmp.ge.s32.totalorder %s40, 2
      %s42 = scalar_select %p41, 0, %s40
      %s43 = sadd.s32 1, %s27
      %s44 = scalar_select %p41, %s43, %s27
      %p45 = scmp.ge.s32.totalorder %s44, 2
      %s46 = scalar_select %p45, 0, %s44
      %s47 = ssub.s32 %s27, %s46
      %s48 = ssub.s32 %s28, %s42
      %s49 = sor.u32 %s47, %s48
      %p50 = scmp.eq.s32.totalorder %s49, 0
      %s52 = sadd.s32 %s51, 1
      %s53 = scalar_select %p50, %s51, %s52
      %p56 = pneg %p50
      %p57 = scmp.eq.s32.totalorder %s20, 39
      %p58 = por %p56, %p57
      %p59 = scmp.ne.s32.totalorder %s51, %s54
      %p60 = scmp.eq.s32.totalorder %s20, 0
      %p61 = por %p59, %p60
      %p62 = scmp.ne.s32.totalorder %s51, %s54
      %p63 = scmp.eq.s32.totalorder %s25, 39
      %p64 = por %p62, %p63
      %p65 = scmp.ne.s32.totalorder %s54, %s55
      %p66 = scmp.eq.s32.totalorder %s25, 0
      %p67 = por %p65, %p66
      %p68 = scmp.ne.s32.totalorder %s54, %s55
      %p69 = scmp.eq.s32.totalorder %s26, 39
      %p70 = por %p68, %p69
      %p72 = scmp.ne.s32.totalorder %s55, %s71
      %p73 = scmp.eq.s32.totalorder %s26, 0
      %p74 = por %p72, %p73
      %s75 = ssub.s32 %s29, %s38
      %p76 = scmp.eq.s32.totalorder %s75, 0
      %s78 = sadd.s32 %s77, 1
      %s79 = scalar_select %p76, %s77, %s78
      %p82 = pneg %p76
      %p83 = scmp.eq.s32.totalorder %s20, 39
      %p84 = por %p82, %p83
      %p85 = scmp.ne.s32.totalorder %s77, %s80
      %p86 = scmp.eq.s32.totalorder %s20, 0
      %p87 = por %p85, %p86
      %p88 = scmp.ne.s32.totalorder %s77, %s80
      %p89 = scmp.eq.s32.totalorder %s25, 39
      %p90 = por %p88, %p89
      %p91 = scmp.ne.s32.totalorder %s80, %s81
      %p92 = scmp.eq.s32.totalorder %s25, 0
      %p93 = por %p91, %p92
      %p94 = scmp.ne.s32.totalorder %s80, %s81
      %p95 = scmp.eq.s32.totalorder %s26, 39
      %p96 = por %p94, %p95
      %p98 = scmp.ne.s32.totalorder %s81, %s97
      %p99 = scmp.eq.s32.totalorder %s26, 0
      %p100 = por %p98, %p99
      %s101 = ssub.s32 %s29, %s38
      %p102 = scmp.eq.s32.totalorder %s101, 0
      %s104 = sadd.s32 %s103, 1
      %s105 = scalar_select %p102, %s103, %s104
      %p108 = pneg %p102
      %p109 = scmp.eq.s32.totalorder %s20, 39
      %p110 = por %p108, %p109
      %p111 = scmp.ne.s32.totalorder %s103, %s106
      %p112 = scmp.eq.s32.totalorder %s20, 0
      %p113 = por %p111, %p112
      %p114 = scmp.ne.s32.totalorder %s103, %s106
      %p115 = scmp.eq.s32.totalorder %s25, 39
      %p116 = por %p114, %p115
      %p117 = scmp.ne.s32.totalorder %s106, %s107
      %p118 = scmp.eq.s32.totalorder %s25, 0
      %p119 = por %p117, %p118
      %p120 = scmp.ne.s32.totalorder %s106, %s107
      %p121 = scmp.eq.s32.totalorder %s26, 39
      %p122 = por %p120, %p121
      %p124 = scmp.ne.s32.totalorder %s107, %s123
      %p125 = scmp.eq.s32.totalorder %s26, 0
      %p126 = por %p124, %p125
      %s128 = sadd.s32 %s127, 1
      %p131 = scmp.eq.s32.totalorder %s20, 39
      %p132 = scmp.ne.s32.totalorder %s127, %s129
      %p133 = scmp.eq.s32.totalorder %s20, 0
      %p134 = por %p132, %p133
      %p135 = scmp.ne.s32.totalorder %s127, %s129
      %p136 = scmp.eq.s32.totalorder %s25, 39
      %p137 = por %p135, %p136
      %p138 = scmp.ne.s32.totalorder %s129, %s130
      %p139 = scmp.eq.s32.totalorder %s25, 0
      %p140 = por %p138, %p139
      %p141 = scmp.ne.s32.totalorder %s129, %s130
      %p142 = scmp.eq.s32.totalorder %s26, 39
      %p143 = por %p141, %p142
      %p145 = scmp.ne.s32.totalorder %s130, %s144
      %p146 = scmp.eq.s32.totalorder %s26, 0
      %p147 = por %p145, %p146
      %s149 = sadd.s32 %s148, 1
      %p152 = scmp.eq.s32.totalorder %s20, 39
      %p153 = scmp.ne.s32.totalorder %s148, %s150
      %p154 = scmp.eq.s32.totalorder %s20, 0
      %p155 = por %p153, %p154
      %p156 = scmp.ne.s32.totalorder %s148, %s150
      %p157 = scmp.eq.s32.totalorder %s25, 39
      %p158 = por %p156, %p157
      %p159 = scmp.ne.s32.totalorder %s150, %s151
      %p160 = scmp.eq.s32.totalorder %s25, 0
      %p161 = por %p159, %p160
      %p162 = scmp.ne.s32.totalorder %s150, %s151
      %p163 = scmp.eq.s32.totalorder %s26, 39
      %p164 = por %p162, %p163
      %p166 = scmp.ne.s32.totalorder %s151, %s165
      %p167 = scmp.eq.s32.totalorder %s26, 0
      %p168 = por %p166, %p167
      %s169 = ssub.s32 %s27, %s46
      %s170 = ssub.s32 %s28, %s42
      %s171 = sor.u32 %s169, %s170
      %p172 = scmp.eq.s32.totalorder %s171, 0
      %s174 = sadd.s32 %s173, 1
      %s175 = scalar_select %p172, %s173, %s174
      %p178 = pneg %p172
      %p179 = scmp.eq.s32.totalorder %s20, 39
      %p180 = por %p178, %p179
      %p181 = scmp.ne.s32.totalorder %s173, %s176
      %p182 = scmp.eq.s32.totalorder %s20, 0
      %p183 = por %p181, %p182
      %p184 = scmp.ne.s32.totalorder %s173, %s176
      %p185 = scmp.eq.s32.totalorder %s25, 39
      %p186 = por %p184, %p185
      %p187 = scmp.ne.s32.totalorder %s176, %s177
      %p188 = scmp.eq.s32.totalorder %s25, 0
      %p189 = por %p187, %p188
      %p190 = scmp.ne.s32.totalorder %s176, %s177
      %p191 = scmp.eq.s32.totalorder %s26, 39
      %p192 = por %p190, %p191
      %p194 = scmp.ne.s32.totalorder %s177, %s193
      %p195 = scmp.eq.s32.totalorder %s26, 0
      %p196 = por %p194, %p195
      %p197 = scmp.le.s32.totalorder 1, %s20
      %p198 = scmp.lt.s32.totalorder %s20, 41
      %p199 = pnand %p197, %p198
      %p200 = pneg %p199
      // Predicated region
      $region9: #{tpu_custom_call.1} parent=5 // pred_check
        _
      $region10: #{tpu_custom_call.1} parent=5 // pred_check_branch
        %202 = sbr.rel (%p199) target = $region12
      $region11: #{tpu_custom_call.1} parent=5 // pred_region
        %s203 = ssub.s32 %s20, 1
        // Predicated region
        $region13: #{tpu_custom_call.1} parent=11 // pred_check
          %p204 = pneg %p140
        $region14: #{tpu_custom_call.1} parent=11 // pred_check_branch
          %206 = sbr.rel (%p204) target = $region16
        $region15: #{tpu_custom_call.1} parent=11 // pred_region
          _
        $region16: #{tpu_custom_call.1} parent=11 // pred_fallthru
          _
        // Predicated region
        $region17: #{tpu_custom_call.1} parent=11 // pred_check
          %p207 = pneg %p161
        $region18: #{tpu_custom_call.1} parent=11 // pred_check_branch
          %209 = sbr.rel (%p207) target = $region20
        $region19: #{tpu_custom_call.1} parent=11 // pred_region
          _
        $region20: #{tpu_custom_call.1} parent=11 // pred_fallthru
          _
      $region12: #{tpu_custom_call.1} parent=5 // pred_fallthru
        _
      %p210 = scmp.lt.s32.totalorder %s20, 40
      // Predicated region
      $region21: #{tpu_custom_call.1} parent=5 // pred_check
        %p211 = pneg %p210
      $region22: #{tpu_custom_call.1} parent=5 // pred_check_branch
        %213 = sbr.rel (%p211) target = $region24
      $region23: #{tpu_custom_call.1} parent=5 // pred_region
        // Predicated region
        $region25: #{tpu_custom_call.1} parent=23 // pred_check
          %p214 = pneg %p61
        $region26: #{tpu_custom_call.1} parent=23 // pred_check_branch
          %216 = sbr.rel (%p214) target = $region28
        $region27: #{tpu_custom_call.1} parent=23 // pred_region
          %p217 = scmp.lt.s32.totalorder %s27, 1
          %s218 = scalar_select %p217, %s27, 1
          %p219 = scmp.lt.s32.totalorder %s28, 1
          %s220 = scalar_select %p219, %s28, 1
          %s221 = smul.addr %s218, 2
          %s222 = sadd.s32 %s220, %s221
          %s223 = smul.addr %s222, 8
          %s224 = scalar_lea.vmem %s0, %s223
        $region28: #{tpu_custom_call.1} parent=23 // pred_fallthru
          _
        // Predicated region
        $region29: #{tpu_custom_call.1} parent=23 // pred_check
          %p225 = pneg %p87
        $region30: #{tpu_custom_call.1} parent=23 // pred_check_branch
          %227 = sbr.rel (%p225) target = $region32
        $region31: #{tpu_custom_call.1} parent=23 // pred_region
          %s228 = sand.u32 %s77, 1
          %s229 = scalar_lea.sflag [#allocation6], %s228
          %s230 = sand.u32 %s77, 1
          %s231 = smul.addr %s230, 64
          %s232 = scalar_lea.vmem [#allocation5], %s231
          %s234 = ssub.s32 1024, 1024
          %235 = vsyncadd %s229, %s234
          %s236 = smul.addr %s29, 8
          %s237 = smul.addr %s236, 128
          %s238 = scalar_lea.hbm %s1, %s237
          %s239 = sshll.u32 %s232, 4
          %s240 = int_to_ptr.vmem [resolvable:$true] %s239
          %245 = dma.hbm_to_vmem [thread:$0]  %s238, 1024, %s240, %s229, 256, 256, 16
        $region32: #{tpu_custom_call.1} parent=23 // pred_fallthru
          _
        // Predicated region
        $region33: #{tpu_custom_call.1} parent=23 // pred_check
          %p246 = pneg %p113
        $region34: #{tpu_custom_call.1} parent=23 // pred_check_branch
          %248 = sbr.rel (%p246) target = $region36
        $region35: #{tpu_custom_call.1} parent=23 // pred_region
          %s249 = sand.u32 %s103, 1
          %s250 = scalar_lea.sflag [#allocation9], %s249
          %s251 = sand.u32 %s103, 1
          %s252 = smul.addr %s251, 64
          %s253 = scalar_lea.vmem [#allocation8], %s252
          %s255 = ssub.s32 1024, 1024
          %256 = vsyncadd %s250, %s255
          %s257 = smul.addr %s29, 8
          %s258 = smul.addr %s257, 128
          %s259 = scalar_lea.hbm %s2, %s258
          %s260 = sshll.u32 %s253, 4
          %s261 = int_to_ptr.vmem [resolvable:$true] %s260
          %266 = dma.hbm_to_vmem [thread:$0]  %s259, 1024, %s261, %s250, 256, 256, 16
        $region36: #{tpu_custom_call.1} parent=23 // pred_fallthru
          _
      $region24: #{tpu_custom_call.1} parent=5 // pred_fallthru
        _
      %p267 = scmp.le.s32.totalorder 1, %s20
      %p268 = scmp.lt.s32.totalorder %s20, 41
      %p269 = pnand %p267, %p268
      %p270 = pneg %p269
      // Predicated region
      $region37: #{tpu_custom_call.1} parent=5 // pred_check
        _
      $region38: #{tpu_custom_call.1} parent=5 // pred_check_branch
        %272 = sbr.rel (%p269) target = $region40
      $region39: #{tpu_custom_call.1} parent=5 // pred_region
        %s273 = ssub.s32 %s20, 1
        %s274 = sand.u32 %s80, 1
        %s275 = scalar_lea.sflag [#allocation6], %s274
        %s276 = sand.u32 %s80, 1
        %s277 = smul.addr %s276, 64
        %s278 = scalar_lea.vmem [#allocation5], %s277
        // Predicated region
        $region41: #{tpu_custom_call.1} parent=39 // pred_check
          %p279 = pneg %p93
        $region42: #{tpu_custom_call.1} parent=39 // pred_check_branch
          %281 = sbr.rel (%p279) target = $region44
        $region43: #{tpu_custom_call.1} parent=39 // pred_region
          %282 = dma.done %s275, 1024
        $region44: #{tpu_custom_call.1} parent=39 // pred_fallthru
          _
        %s283 = sand.u32 %s106, 1
        %s284 = scalar_lea.sflag [#allocation9], %s283
        %s285 = sand.u32 %s106, 1
        %s286 = smul.addr %s285, 64
        %s287 = scalar_lea.vmem [#allocation8], %s286
        // Predicated region
        $region45: #{tpu_custom_call.1} parent=39 // pred_check
          %p288 = pneg %p119
        $region46: #{tpu_custom_call.1} parent=39 // pred_check_branch
          %290 = sbr.rel (%p288) target = $region48
        $region47: #{tpu_custom_call.1} parent=39 // pred_region
          %291 = dma.done %s284, 1024
        $region48: #{tpu_custom_call.1} parent=39 // pred_fallthru
          _
        %p292 = scmp.lt.s32.totalorder %s30, 1
        %s293 = scalar_select %p292, %s30, 1
        %p294 = scmp.lt.s32.totalorder %s31, 1
        %s295 = scalar_select %p294, %s31, 1
        %s296 = smul.addr %s293, 2
        %s297 = sadd.s32 %s295, %s296
        %s298 = smul.addr %s297, 8
        %s299 = scalar_lea.vmem %s0, %s298
        %p300 = pneg %p67
        %p301 = pneg %p64
        %s302 = sand.u32 %s80, 1
        %s303 = scalar_lea.sflag [#allocation6], %s302
        %s304 = sand.u32 %s80, 1
        %s305 = smul.addr %s304, 64
        %s306 = scalar_lea.vmem [#allocation5], %s305
        %p307 = pneg %p93
        %p308 = pneg %p90
        %s309 = sand.u32 %s106, 1
        %s310 = scalar_lea.sflag [#allocation9], %s309
        %s311 = sand.u32 %s106, 1
        %s312 = smul.addr %s311, 64
        %s313 = scalar_lea.vmem [#allocation8], %s312
        %p314 = pneg %p119
        %p315 = pneg %p116
        %p316 = pneg %p140
        %p317 = pneg %p137
        %p318 = pneg %p161
        %p319 = pneg %p158
        %p320 = pneg %p189
        %p321 = pneg %p186
        %s322 = sand.u32 %s176, 1
        %s323 = scalar_lea.sflag [#allocation7], %s322
        %s324 = sand.u32 %s176, 1
        %s325 = smul.addr %s324, 8
        %s326 = scalar_lea.vmem [#allocation10], %s325
        %p327 = scmp.lt.s32.totalorder %s30, 1
        %s328 = scalar_select %p327, %s30, 1
        %p329 = scmp.lt.s32.totalorder %s31, 1
        %s330 = scalar_select %p329, %s31, 1
        %s331 = smul.addr %s328, 2
        %s332 = sadd.s32 %s330, %s331
        %s333 = smul.addr %s332, 8
        %s334 = scalar_lea.vmem %s0, %s333
        %v335 = vld [vmem:[%s334] sm:$0xff]
        %p336 = scmp.eq.s32.totalorder %s32, 0
        // Predicated region
        $region49: #{tpu_custom_call.1} parent=39 // pred_check
          %p337 = pneg %p336
        $region50: #{tpu_custom_call.1} parent=39 // pred_check_branch
          %339 = sbr.rel (%p337) target = $region52
        $region51: #{tpu_custom_call.1} parent=39 // pred_region
          %v340 = vld [vmem:[%s3] sm:$0xff]
          %v341 = vld [vmem:[%s3 + $0x8] sm:$0xff]
          %v342 = vld [vmem:[%s3 + $0x10] sm:$0xff]
          %v343 = vld [vmem:[%s3 + $0x18] sm:$0xff]
          %v344 = vld [vmem:[%s3 + $0x20] sm:$0xff]
          %v345 = vld [vmem:[%s3 + $0x28] sm:$0xff]
          %v346 = vld [vmem:[%s3 + $0x30] sm:$0xff]
          %v347 = vld [vmem:[%s3 + $0x38] sm:$0xff]
          %vm348 = vcmask 261120
          %v350 = vsel %vm348, %v335, 0
          %352 = vmatprep.subr.mxu0 %v341
          %353 = vmatpush1.msra.mxu0 %v340
          %354 = vmatprep.subr.mxu0 %v343
          %355 = vmatpush1.msra.mxu0 %v342
          %356 = vmatprep.subr.mxu0 %v345
          %357 = vmatpush1.msra.mxu0 %v344
          %358 = vmatprep.subr.mxu0 %v347
          %359 = vmatpush1.msra.mxu0 %v346
          %360 = vmatprep.subr.mxu0 0.0
          %361 = vmatpush1.msra.mxu0 0.0
          %362 = vmatprep.subr.mxu0 0.0
          %363 = vmatpush1.msra.mxu0 0.0
          %364 = vmatprep.subr.mxu0 0.0
          %365 = vmatpush1.msra.mxu0 0.0
          %366 = vmatprep.subr.mxu0 0.0
          %367 = vmatpush1.msra.mxu0 0.0
          %368 = vmatprep.subr.mxu0 0.0
          %369 = vmatpush1.msra.mxu0 0.0
          %370 = vmatprep.subr.mxu0 0.0
          %371 = vmatpush1.msra.mxu0 0.0
          %372 = vmatprep.subr.mxu0 0.0
          %373 = vmatpush1.msra.mxu0 0.0
          %374 = vmatprep.subr.mxu0 0.0
          %375 = vmatpush1.msra.mxu0 0.0
          %376 = vmatprep.subr.mxu0 0.0
          %377 = vmatpush1.msra.mxu0 0.0
          %378 = vmatprep.subr.mxu0 0.0
          %379 = vmatpush1.msra.mxu0 0.0
          %380 = vmatprep.subr.mxu0 0.0
          %381 = vmatpush1.msra.mxu0 0.0
          %382 = vmatprep.subr.mxu0 0.0
          %383 = vmatpush1.msra.mxu0 0.0
          %384 = vmatprep.subr.mxu0 0.0
          %385 = vmatpush1.msra.mxu0 0.0
          %386 = vmatprep.subr.mxu0 0.0
          %387 = vmatpush1.msra.mxu0 0.0
          %388 = vmatprep.subr.mxu0 0.0
          %389 = vmatpush1.msra.mxu0 0.0
          %390 = vmatprep.subr.mxu0 0.0
          %391 = vmatpush1.msra.mxu0 0.0
          %392 = vmatprep.subr.mxu0 0.0
          %393 = vmatpush1.msra.mxu0 0.0
          %394 = vmatprep.subr.mxu0 0.0
          %395 = vmatpush1.msra.mxu0 0.0
          %396 = vmatprep.subr.mxu0 0.0
          %397 = vmatpush1.msra.mxu0 0.0
          %398 = vmatprep.subr.mxu0 0.0
          %399 = vmatpush1.msra.mxu0 0.0
          %400 = vmatprep.subr.mxu0 0.0
          %401 = vmatpush1.msra.mxu0 0.0
          %402 = vmatprep.subr.mxu0 0.0
          %403 = vmatpush1.msra.mxu0 0.0
          %404 = vmatprep.subr.mxu0 0.0
          %405 = vmatpush1.msra.mxu0 0.0
          %406 = vmatprep.subr.mxu0 0.0
          %407 = vmatpush1.msra.mxu0 0.0
          %408 = vmatprep.subr.mxu0 0.0
          %409 = vmatpush1.msra.mxu0 0.0
          %410 = vmatprep.subr.mxu0 0.0
          %411 = vmatpush1.msra.mxu0 0.0
          %412 = vmatprep.subr.mxu0 0.0
          %413 = vmatpush1.msra.mxu0 0.0
          %414 = vmatprep.subr.mxu0 0.0
          %415 = vmatpush1.msra.mxu0 0.0
          %416 = vmatprep.mubr.f32.mxu0 0.0
          %417 = vmatmul.mubr.f32.gmra.mrb[0].mxu0 %v350
          %v418 = vpop.f32.mrb[0].mxu0
          %v419 = vadd.f32 0.0, %v418
          %v420 = vpop.f32.mrb[0].mxu0
          %v421 = vadd.f32 0.0, %v420
          %422 = vdwg.mxu0
          %423 = vst [vmem:[#allocation2] sm:$0xff] %v419
          %424 = vst [vmem:[#allocation2 + $0x8] sm:$0xff] %v421
          %425 = vst [vmem:[#allocation3] sm:$0xff] 0.0
          %426 = vst [vmem:[#allocation3 + $0x8] sm:$0xff] 0.0
        $region52: #{tpu_custom_call.1} parent=39 // pred_fallthru
          _
        %v427 = vld [vmem:[%s278] sm:$0xff]
        %v428 = vld [vmem:[%s278 + $0x8] sm:$0xff]
        %v429 = vld [vmem:[%s278 + $0x10] sm:$0xff]
        %v430 = vld [vmem:[%s278 + $0x18] sm:$0xff]
        %v431 = vld [vmem:[%s278 + $0x20] sm:$0xff]
        %v432 = vld [vmem:[%s278 + $0x28] sm:$0xff]
        %v433 = vld [vmem:[%s278 + $0x30] sm:$0xff]
        %v434 = vld [vmem:[%s278 + $0x38] sm:$0xff]
        %vm435 = vcmask 261120
        %v437 = vsel %vm435, %v335, 0
        %439 = vmatprep.subr.mxu0 %v428
        %440 = vmatpush1.msra.mxu0 %v427
        %441 = vmatprep.subr.mxu0 %v430
        %442 = vmatpush1.msra.mxu0 %v429
        %443 = vmatprep.subr.mxu0 %v432
        %444 = vmatpush1.msra.mxu0 %v431
        %445 = vmatprep.subr.mxu0 %v434
        %446 = vmatpush1.msra.mxu0 %v433
        %447 = vmatprep.subr.mxu0 0.0
        %448 = vmatpush1.msra.mxu0 0.0
        %449 = vmatprep.subr.mxu0 0.0
        %450 = vmatpush1.msra.mxu0 0.0
        %451 = vmatprep.subr.mxu0 0.0
        %452 = vmatpush1.msra.mxu0 0.0
        %453 = vmatprep.subr.mxu0 0.0
        %454 = vmatpush1.msra.mxu0 0.0
        %455 = vmatprep.subr.mxu0 0.0
        %456 = vmatpush1.msra.mxu0 0.0
        %457 = vmatprep.subr.mxu0 0.0
        %458 = vmatpush1.msra.mxu0 0.0
        %459 = vmatprep.subr.mxu0 0.0
        %460 = vmatpush1.msra.mxu0 0.0
        %461 = vmatprep.subr.mxu0 0.0
        %462 = vmatpush1.msra.mxu0 0.0
        %463 = vmatprep.subr.mxu0 0.0
        %464 = vmatpush1.msra.mxu0 0.0
        %465 = vmatprep.subr.mxu0 0.0
        %466 = vmatpush1.msra.mxu0 0.0
        %467 = vmatprep.subr.mxu0 0.0
        %468 = vmatpush1.msra.mxu0 0.0
        %469 = vmatprep.subr.mxu0 0.0
        %470 = vmatpush1.msra.mxu0 0.0
        %471 = vmatprep.subr.mxu0 0.0
        %472 = vmatpush1.msra.mxu0 0.0
        %473 = vmatprep.subr.mxu0 0.0
        %474 = vmatpush1.msra.mxu0 0.0
        %475 = vmatprep.subr.mxu0 0.0
        %476 = vmatpush1.msra.mxu0 0.0
        %477 = vmatprep.subr.mxu0 0.0
        %478 = vmatpush1.msra.mxu0 0.0
        %479 = vmatprep.subr.mxu0 0.0
        %480 = vmatpush1.msra.mxu0 0.0
        %481 = vmatprep.subr.mxu0 0.0
        %482 = vmatpush1.msra.mxu0 0.0
        %483 = vmatprep.subr.mxu0 0.0
        %484 = vmatpush1.msra.mxu0 0.0
        %485 = vmatprep.subr.mxu0 0.0
        %486 = vmatpush1.msra.mxu0 0.0
        %487 = vmatprep.subr.mxu0 0.0
        %488 = vmatpush1.msra.mxu0 0.0
        %489 = vmatprep.subr.mxu0 0.0
        %490 = vmatpush1.msra.mxu0 0.0
        %491 = vmatprep.subr.mxu0 0.0
        %492 = vmatpush1.msra.mxu0 0.0
        %493 = vmatprep.subr.mxu0 0.0
        %494 = vmatpush1.msra.mxu0 0.0
        %495 = vmatprep.subr.mxu0 0.0
        %496 = vmatpush1.msra.mxu0 0.0
        %497 = vmatprep.subr.mxu0 0.0
        %498 = vmatpush1.msra.mxu0 0.0
        %499 = vmatprep.subr.mxu0 0.0
        %500 = vmatpush1.msra.mxu0 0.0
        %501 = vmatprep.subr.mxu0 0.0
        %502 = vmatpush1.msra.mxu0 0.0
        %503 = vmatprep.mubr.f32.mxu0 0.0
        %504 = vmatmul.mubr.f32.gmra.mrb[0].mxu0 %v437
        %v505 = vpop.f32.mrb[0].mxu0
        %v506 = vadd.f32 0.0, %v505
        %v507 = vpop.f32.mrb[0].mxu0
        %v508 = vadd.f32 0.0, %v507
        %509 = vdwg.mxu0
        %v510 = vld [vmem:[%s287] sm:$0xff]
        %v511 = vld [vmem:[%s287 + $0x8] sm:$0xff]
        %v512 = vld [vmem:[%s287 + $0x10] sm:$0xff]
        %v513 = vld [vmem:[%s287 + $0x18] sm:$0xff]
        %v514 = vld [vmem:[%s287 + $0x20] sm:$0xff]
        %v515 = vld [vmem:[%s287 + $0x28] sm:$0xff]
        %v516 = vld [vmem:[%s287 + $0x30] sm:$0xff]
        %v517 = vld [vmem:[%s287 + $0x38] sm:$0xff]
        %518 = vmatprep.subr.mxu0 %v511
        %519 = vmatpush1.msra.mxu0 %v510
        %520 = vmatprep.subr.mxu0 %v513
        %521 = vmatpush1.msra.mxu0 %v512
        %522 = vmatprep.subr.mxu0 %v515
        %523 = vmatpush1.msra.mxu0 %v514
        %524 = vmatprep.subr.mxu0 %v517
        %525 = vmatpush1.msra.mxu0 %v516
        %526 = vmatprep.subr.mxu0 0.0
        %527 = vmatpush1.msra.mxu0 0.0
        %528 = vmatprep.subr.mxu0 0.0
        %529 = vmatpush1.msra.mxu0 0.0
        %530 = vmatprep.subr.mxu0 0.0
        %531 = vmatpush1.msra.mxu0 0.0
        %532 = vmatprep.subr.mxu0 0.0
        %533 = vmatpush1.msra.mxu0 0.0
        %534 = vmatprep.subr.mxu0 0.0
        %535 = vmatpush1.msra.mxu0 0.0
        %536 = vmatprep.subr.mxu0 0.0
        %537 = vmatpush1.msra.mxu0 0.0
        %538 = vmatprep.subr.mxu0 0.0
        %539 = vmatpush1.msra.mxu0 0.0
        %540 = vmatprep.subr.mxu0 0.0
        %541 = vmatpush1.msra.mxu0 0.0
        %542 = vmatprep.subr.mxu0 0.0
        %543 = vmatpush1.msra.mxu0 0.0
        %544 = vmatprep.subr.mxu0 0.0
        %545 = vmatpush1.msra.mxu0 0.0
        %546 = vmatprep.subr.mxu0 0.0
        %547 = vmatpush1.msra.mxu0 0.0
        %548 = vmatprep.subr.mxu0 0.0
        %549 = vmatpush1.msra.mxu0 0.0
        %550 = vmatprep.subr.mxu0 0.0
        %551 = vmatpush1.msra.mxu0 0.0
        %552 = vmatprep.subr.mxu0 0.0
        %553 = vmatpush1.msra.mxu0 0.0
        %554 = vmatprep.subr.mxu0 0.0
        %555 = vmatpush1.msra.mxu0 0.0
        %556 = vmatprep.subr.mxu0 0.0
        %557 = vmatpush1.msra.mxu0 0.0
        %558 = vmatprep.subr.mxu0 0.0
        %559 = vmatpush1.msra.mxu0 0.0
        %560 = vmatprep.subr.mxu0 0.0
        %561 = vmatpush1.msra.mxu0 0.0
        %562 = vmatprep.subr.mxu0 0.0
        %563 = vmatpush1.msra.mxu0 0.0
        %564 = vmatprep.subr.mxu0 0.0
        %565 = vmatpush1.msra.mxu0 0.0
        %566 = vmatprep.subr.mxu0 0.0
        %567 = vmatpush1.msra.mxu0 0.0
        %568 = vmatprep.subr.mxu0 0.0
        %569 = vmatpush1.msra.mxu0 0.0
        %570 = vmatprep.subr.mxu0 0.0
        %571 = vmatpush1.msra.mxu0 0.0
        %572 = vmatprep.subr.mxu0 0.0
        %573 = vmatpush1.msra.mxu0 0.0
        %574 = vmatprep.subr.mxu0 0.0
        %575 = vmatpush1.msra.mxu0 0.0
        %576 = vmatprep.subr.mxu0 0.0
        %577 = vmatpush1.msra.mxu0 0.0
        %578 = vmatprep.subr.mxu0 0.0
        %579 = vmatpush1.msra.mxu0 0.0
        %580 = vmatprep.subr.mxu0 0.0
        %581 = vmatpush1.msra.mxu0 0.0
        %582 = vmatprep.mubr.f32.mxu0 0.0
        %583 = vmatmul.mubr.f32.gmra.mrb[0].mxu0 %v437
        %v584 = vpop.f32.mrb[0].mxu0
        %v585 = vadd.f32 0.0, %v584
        %v586 = vpop.f32.mrb[0].mxu0
        %v587 = vadd.f32 0.0, %v586
        %588 = vdwg.mxu0
        %v589 = vld [vmem:[#allocation2] sm:$0xff]
        %v590 = vld [vmem:[#allocation2 + $0x8] sm:$0xff]
        %v591 = vmul.f32 %v585, %v589
        %v592 = vmul.f32 %v587, %v590
        %v593 = vsub.f32 %v591, %v592
        %v594 = vmul.f32 %v585, %v590
        %v595 = vmul.f32 %v587, %v589
        %v596 = vadd.f32 %v594, %v595
        %v597 = vlaneseq
        %v598 = vshrl.u32 %v597, 7
        %v599 = vlaneseq
        %v600 = vand.u32 %v599, 127
        %vm601 = vcmp.le.s32.totalorder %v600, %v598
        %v602 = vsel %vm601, 1, 0
        %v603 = vcvt.s32.f32 %v602
        %p604 = scmp.gt.s32.totalorder %s31, 0
        %s605 = smul.u32 %s32, 2
        %s606 = scalar_lea.vmem [#allocation4], %s605
        %v607 = vld [vmem:[%s606] sm:$0x3]
        %s608 = scalar_select %p604, 1, 0
        %v609 = vstv %s608
        %vm610 = vcmp.eq.s32.totalorder %v609, 1
        %v611 = vsel %vm610, %v607, 0.0
        %v613 = vlaneseq
        %v614 = vshrl.u32 %v613, 7
        %v615 = vsub.s32 0, %v614
        %v616 = vrot.slane %v611, %v615
        %v617 = vlaneseq
        %v618 = vshrl.u32 %v617, 7
        %v619 = vsub.s32 1, %v618
        %v620 = vrot.slane %v611, %v619
        %vm623 = vcmask 64512
        %v625 = vsel %vm623, %v603, 0
        %627 = vmatprep.subr.mxu0 %v596
        %628 = vmatpush1.msra.mxu0 %v593
        %629 = vmatprep.subr.mxu0 0.0
        %630 = vmatpush1.msra.mxu0 0.0
        %631 = vmatprep.subr.mxu0 0.0
        %632 = vmatpush1.msra.mxu0 0.0
        %633 = vmatprep.subr.mxu0 0.0
        %634 = vmatpush1.msra.mxu0 0.0
        %635 = vmatprep.subr.mxu0 0.0
        %636 = vmatpush1.msra.mxu0 0.0
        %637 = vmatprep.subr.mxu0 0.0
        %638 = vmatpush1.msra.mxu0 0.0
        %639 = vmatprep.subr.mxu0 0.0
        %640 = vmatpush1.msra.mxu0 0.0
        %641 = vmatprep.subr.mxu0 0.0
        %642 = vmatpush1.msra.mxu0 0.0
        %643 = vmatprep.subr.mxu0 0.0
        %644 = vmatpush1.msra.mxu0 0.0
        %645 = vmatprep.subr.mxu0 0.0
        %646 = vmatpush1.msra.mxu0 0.0
        %647 = vmatprep.subr.mxu0 0.0
        %648 = vmatpush1.msra.mxu0 0.0
        %649 = vmatprep.subr.mxu0 0.0
        %650 = vmatpush1.msra.mxu0 0.0
        %651 = vmatprep.subr.mxu0 0.0
        %652 = vmatpush1.msra.mxu0 0.0
        %653 = vmatprep.subr.mxu0 0.0
        %654 = vmatpush1.msra.mxu0 0.0
        %655 = vmatprep.subr.mxu0 0.0
        %656 = vmatpush1.msra.mxu0 0.0
        %657 = vmatprep.subr.mxu0 0.0
        %658 = vmatpush1.msra.mxu0 0.0
        %659 = vmatprep.subr.mxu0 0.0
        %660 = vmatpush1.msra.mxu0 0.0
        %661 = vmatprep.subr.mxu0 0.0
        %662 = vmatpush1.msra.mxu0 0.0
        %663 = vmatprep.subr.mxu0 0.0
        %664 = vmatpush1.msra.mxu0 0.0
        %665 = vmatprep.subr.mxu0 0.0
        %666 = vmatpush1.msra.mxu0 0.0
        %667 = vmatprep.subr.mxu0 0.0
        %668 = vmatpush1.msra.mxu0 0.0
        %669 = vmatprep.subr.mxu0 0.0
        %670 = vmatpush1.msra.mxu0 0.0
        %671 = vmatprep.subr.mxu0 0.0
        %672 = vmatpush1.msra.mxu0 0.0
        %673 = vmatprep.subr.mxu0 0.0
        %674 = vmatpush1.msra.mxu0 0.0
        %675 = vmatprep.subr.mxu0 0.0
        %676 = vmatpush1.msra.mxu0 0.0
        %677 = vmatprep.subr.mxu0 0.0
        %678 = vmatpush1.msra.mxu0 0.0
        %679 = vmatprep.subr.mxu0 0.0
        %680 = vmatpush1.msra.mxu0 0.0
        %681 = vmatprep.subr.mxu0 0.0
        %682 = vmatpush1.msra.mxu0 0.0
        %683 = vmatprep.subr.mxu0 0.0
        %684 = vmatpush1.msra.mxu0 0.0
        %685 = vmatprep.subr.mxu0 0.0
        %686 = vmatpush1.msra.mxu0 0.0
        %687 = vmatprep.subr.mxu0 0.0
        %688 = vmatpush1.msra.mxu0 0.0
        %689 = vmatprep.subr.mxu0 0.0
        %690 = vmatpush1.msra.mxu0 0.0
        %691 = vmatprep.mubr.f32.mxu0 0.0
        %692 = vmatmul.mubr.f32.gmra.mrb[0].mxu0 %v625
        %v693 = vpop.f32.mrb[0].mxu0
        %v694 = vadd.f32 %v616, %v693
        %v695 = vpop.f32.mrb[0].mxu0
        %v696 = vadd.f32 %v620, %v695
        %697 = vdwg.mxu0
        %v700 = vcombine.high %v694, %v696
        %v702 = vunpack.c.l.s4 1966171168
        %v703 = vunpack.c.0.s8 %v702
        %v704 = vlaneseq
        %v705 = vshrl.u32 %v704, 7
        %v706 = vsub.s32 %v703, %v705
        %v707 = vrot.slane %v700, %v706
        %v708 = vcombine.high %v707, %v707
        %v710 = vunpack.c.l.s4 1966171168
        %v711 = vunpack.c.0.s8 %v710
        %v712 = vlaneseq
        %v713 = vshrl.u32 %v712, 7
        %v714 = vsub.s32 %v711, %v713
        %v715 = vrot.slane %v708, %v714
        %v716 = vcombine.high %v715, %v715
        %v718 = vlaneseq
        %vm719 = vcmp.ge.s32.totalorder %v718, 0
        %vm720 = vcmp.lt.s32.totalorder %v718, 256
        %vm721 = vmand %vm719, %vm720
        %722 = vst.msk [vmem:[%s606] sm:$0x3] %vm721, %v716
        %v723 = vld [vmem:[#allocation3] sm:$0xff]
        %v724 = vld [vmem:[#allocation3 + $0x8] sm:$0xff]
        %v725 = vmul.f32 %v694, %v506
        %v726 = vmul.f32 %v696, %v508
        %v727 = vadd.f32 %v725, %v726
        %v728 = vmul.f32 %v696, %v506
        %v729 = vmul.f32 %v694, %v508
        %v730 = vsub.f32 %v728, %v729
        %v731 = vadd.f32 %v723, %v727
        %v732 = vadd.f32 %v724, %v730
        %733 = vst [vmem:[#allocation3] sm:$0xff] %v731
        %734 = vst [vmem:[#allocation3 + $0x8] sm:$0xff] %v732
        %p735 = scmp.eq.s32.totalorder %s32, 9
        // Predicated region
        $region53: #{tpu_custom_call.1} parent=39 // pred_check
          %p736 = pneg %p735
        $region54: #{tpu_custom_call.1} parent=39 // pred_check_branch
          %738 = sbr.rel (%p736) target = $region56
        $region55: #{tpu_custom_call.1} parent=39 // pred_region
          %v739 = vld [vmem:[#allocation3] sm:$0xff]
          %v740 = vld [vmem:[#allocation3 + $0x8] sm:$0xff]
          %v741 = vld [vmem:[%s4] sm:$0xff]
          %v742 = vld [vmem:[%s4 + $0x8] sm:$0xff]
          %v743 = vld [vmem:[%s4 + $0x10] sm:$0xff]
          %v744 = vld [vmem:[%s4 + $0x18] sm:$0xff]
          %v745 = vld [vmem:[%s4 + $0x20] sm:$0xff]
          %v746 = vld [vmem:[%s4 + $0x28] sm:$0xff]
          %v747 = vld [vmem:[%s4 + $0x30] sm:$0xff]
          %v748 = vld [vmem:[%s4 + $0x38] sm:$0xff]
          %v749 = vld [vmem:[%s4 + $0x40] sm:$0xff]
          %v750 = vld [vmem:[%s4 + $0x48] sm:$0xff]
          %v751 = vld [vmem:[%s4 + $0x50] sm:$0xff]
          %v752 = vld [vmem:[%s4 + $0x58] sm:$0xff]
          %v753 = vld [vmem:[%s4 + $0x60] sm:$0xff]
          %v754 = vld [vmem:[%s4 + $0x68] sm:$0xff]
          %v755 = vld [vmem:[%s4 + $0x70] sm:$0xff]
          %v756 = vld [vmem:[%s4 + $0x78] sm:$0xff]
          %v757 = vld [vmem:[%s4 + $0x80] sm:$0xff]
          %v758 = vld [vmem:[%s4 + $0x88] sm:$0xff]
          %v759 = vld [vmem:[%s4 + $0x90] sm:$0xff]
          %v760 = vld [vmem:[%s4 + $0x98] sm:$0xff]
          %v761 = vld [vmem:[%s4 + $0xa0] sm:$0xff]
          %v762 = vld [vmem:[%s4 + $0xa8] sm:$0xff]
          %v763 = vld [vmem:[%s4 + $0xb0] sm:$0xff]
          %v764 = vld [vmem:[%s4 + $0xb8] sm:$0xff]
          %v765 = vld [vmem:[%s4 + $0xc0] sm:$0xff]
          %v766 = vld [vmem:[%s4 + $0xc8] sm:$0xff]
          %v767 = vld [vmem:[%s4 + $0xd0] sm:$0xff]
          %v768 = vld [vmem:[%s4 + $0xd8] sm:$0xff]
          %v769 = vld [vmem:[%s4 + $0xe0] sm:$0xff]
          %v770 = vld [vmem:[%s4 + $0xe8] sm:$0xff]
          %v771 = vld [vmem:[%s4 + $0xf0] sm:$0xff]
          %v772 = vld [vmem:[%s4 + $0xf8] sm:$0xff]
          %773 = vmatprep.subr.mxu0 0.0
          %774 = vmatpush1.msra.mxu0 %v741
          %775 = vmatprep.subr.mxu0 0.0
          %776 = vmatpush1.msra.mxu0 %v742
          %777 = vmatprep.subr.mxu0 0.0
          %778 = vmatpush1.msra.mxu0 %v743
          %779 = vmatprep.subr.mxu0 0.0
          %780 = vmatpush1.msra.mxu0 %v744
          %781 = vmatprep.subr.mxu0 0.0
          %782 = vmatpush1.msra.mxu0 %v745
          %783 = vmatprep.subr.mxu0 0.0
          %784 = vmatpush1.msra.mxu0 %v746
          %785 = vmatprep.subr.mxu0 0.0
          %786 = vmatpush1.msra.mxu0 %v747
          %787 = vmatprep.subr.mxu0 0.0
          %788 = vmatpush1.msra.mxu0 %v748
          %789 = vmatprep.subr.mxu0 0.0
          %790 = vmatpush1.msra.mxu0 %v749
          %791 = vmatprep.subr.mxu0 0.0
          %792 = vmatpush1.msra.mxu0 %v750
          %793 = vmatprep.subr.mxu0 0.0
          %794 = vmatpush1.msra.mxu0 %v751
          %795 = vmatprep.subr.mxu0 0.0
          %796 = vmatpush1.msra.mxu0 %v752
          %797 = vmatprep.subr.mxu0 0.0
          %798 = vmatpush1.msra.mxu0 %v753
          %799 = vmatprep.subr.mxu0 0.0
          %800 = vmatpush1.msra.mxu0 %v754
          %801 = vmatprep.subr.mxu0 0.0
          %802 = vmatpush1.msra.mxu0 %v755
          %803 = vmatprep.subr.mxu0 0.0
          %804 = vmatpush1.msra.mxu0 %v756
          %805 = vmatprep.subr.mxu0 0.0
          %806 = vmatpush1.msra.mxu0 %v757
          %807 = vmatprep.subr.mxu0 0.0
          %808 = vmatpush1.msra.mxu0 %v758
          %809 = vmatprep.subr.mxu0 0.0
          %810 = vmatpush1.msra.mxu0 %v759
          %811 = vmatprep.subr.mxu0 0.0
          %812 = vmatpush1.msra.mxu0 %v760
          %813 = vmatprep.subr.mxu0 0.0
          %814 = vmatpush1.msra.mxu0 %v761
          %815 = vmatprep.subr.mxu0 0.0
          %816 = vmatpush1.msra.mxu0 %v762
          %817 = vmatprep.subr.mxu0 0.0
          %818 = vmatpush1.msra.mxu0 %v763
          %819 = vmatprep.subr.mxu0 0.0
          %820 = vmatpush1.msra.mxu0 %v764
          %821 = vmatprep.subr.mxu0 0.0
          %822 = vmatpush1.msra.mxu0 %v765
          %823 = vmatprep.subr.mxu0 0.0
          %824 = vmatpush1.msra.mxu0 %v766
          %825 = vmatprep.subr.mxu0 0.0
          %826 = vmatpush1.msra.mxu0 %v767
          %827 = vmatprep.subr.mxu0 0.0
          %828 = vmatpush1.msra.mxu0 %v768
          %829 = vmatprep.subr.mxu0 0.0
          %830 = vmatpush1.msra.mxu0 %v769
          %831 = vmatprep.subr.mxu0 0.0
          %832 = vmatpush1.msra.mxu0 %v770
          %833 = vmatprep.subr.mxu0 0.0
          %834 = vmatpush1.msra.mxu0 %v771
          %835 = vmatprep.subr.mxu0 0.0
          %836 = vmatpush1.msra.mxu0 %v772
          %837 = vmatprep.mubr.f32.mxu0 %v740
          %838 = vmatmul.mubr.f32.gmra.mrb[0].mxu0 %v739
          %v839 = vpop.f32.mrb[0].mxu0
          %v840 = vadd.f32 0.0, %v839
          %v841 = vpop.f32.mrb[0].mxu0
          %842 = vdwg.mxu0
          %843 = vst.msk [vmem:[%s326] sm:$0xff] %vm435, %v840
        $region56: #{tpu_custom_call.1} parent=39 // pred_fallthru
          _
        %s844 = sand.u32 %s176, 1
        %s845 = scalar_lea.sflag [#allocation7], %s844
        %s846 = sand.u32 %s176, 1
        %s847 = smul.addr %s846, 8
        %s848 = scalar_lea.vmem [#allocation10], %s847
        // Predicated region
        $region57: #{tpu_custom_call.1} parent=39 // pred_check
          %p849 = pneg %p186
        $region58: #{tpu_custom_call.1} parent=39 // pred_check_branch
          %851 = sbr.rel (%p849) target = $region60
        $region59: #{tpu_custom_call.1} parent=39 // pred_region
          %s853 = ssub.s32 128, 128
          %854 = vsyncadd %s845, %s853
          %s855 = smul.addr %s30, 2
          %s856 = sadd.s32 %s31, %s855
          %s857 = smul.addr %s856, 128
          %s858 = scalar_lea.hbm %s5, %s857
          %s860 = sshll.u32 %s848, 4
          %s861 = int_to_ptr.vmem [resolvable:$true] %s860
          %863 = dma.vmem_to_hbm [thread:$0]  %s861, 128, %s858, %s845
        $region60: #{tpu_custom_call.1} parent=39 // pred_fallthru
          _
      $region40: #{tpu_custom_call.1} parent=5 // pred_fallthru
        _
      %p864 = scmp.le.s32.totalorder 2, %s20
      // Predicated region
      $region61: #{tpu_custom_call.1} parent=5 // pred_check
        %p865 = pneg %p864
      $region62: #{tpu_custom_call.1} parent=5 // pred_check_branch
        %867 = sbr.rel (%p865) target = $region64
      $region63: #{tpu_custom_call.1} parent=5 // pred_region
        %s868 = ssub.s32 %s20, 2
        // Predicated region
        $region65: #{tpu_custom_call.1} parent=63 // pred_check
          %p869 = pneg %p192
        $region66: #{tpu_custom_call.1} parent=63 // pred_check_branch
          %871 = sbr.rel (%p869) target = $region68
        $region67: #{tpu_custom_call.1} parent=63 // pred_region
          %s872 = sand.u32 %s177, 1
          %s873 = scalar_lea.sflag [#allocation7], %s872
          %s874 = sand.u32 %s177, 1
          %s875 = smul.addr %s874, 8
          %s876 = scalar_lea.vmem [#allocation10], %s875
          %877 = dma.done %s873, 128
        $region68: #{tpu_custom_call.1} parent=63 // pred_fallthru
          _
      $region64: #{tpu_custom_call.1} parent=5 // pred_fallthru
        _
    $region6: #{tpu_custom_call.1} parent=1 // loop_footer
      %s24 = sadd.s32 1, %s20
    $region7: #{tpu_custom_call.1} parent=1 // loop_footer_branch
      %19 = sbr.rel target = $region3
    $region8: #{tpu_custom_call.1} parent=1 // loop_exit
      _
    %878 = vsyncpa [#allocation6], 1
    %s879 = scalar_lea.sflag [#allocation6], 1
    %880 = vsyncpa %s879, 1
    %881 = vsyncpa [#allocation9], 1
    %s882 = scalar_lea.sflag [#allocation9], 1
    %883 = vsyncpa %s882, 1
    %884 = vsyncpa [#allocation7], 1
    %s885 = scalar_lea.sflag [#allocation7], 1
    %886 = vsyncpa %s885, 1

</llo_original>
